<compile_context>
chip_gen: v7x
topology: tpu7x:2x2x1
jax: 0.10.0
libtpu: 0.0.40
codegen_flags: <defaults>
</compile_context>

<pallas_src>
import math
import jax
import jax.numpy as jnp
from jax import lax
from jax.experimental import pallas as pl
from jax.experimental.pallas import tpu as pltpu


# Scoped-VMEM limit / working-set budget used for chunk sizing.
# v5e/v6e: 128 MiB physical (64 MiB limit is safe). v7x: halve these (64 MiB physical).
_VMEM_LIMIT_BYTES = 64 * 1024 * 1024
_VMEM_BUDGET = int(0.6 * _VMEM_LIMIT_BYTES)


# ------------------------------- helpers ------------------------------------

def _pick_chunk(n, cap, mult=1):
    """Largest divisor of n that is <= cap and (a multiple of `mult` or equal to n)."""
    cap = max(1, min(cap, n))
    for d in range(cap, 0, -1):
        if n % d == 0 and (d % mult == 0 or d == n):
            return d
    return n  # no aligned divisor <= cap; full dim is always a legal block shape


def _fit_chunk(n, cap, mult, per_unit_bytes, fixed_bytes, budget):
    """Largest chunk (per _pick_chunk) whose estimated double-buffered footprint fits the budget."""
    c = _pick_chunk(n, cap, mult)
    while c > 1 and fixed_bytes + c * per_unit_bytes > budget:
        nxt = _pick_chunk(n, c - 1, mult)
        if nxt >= c:
            break
        c = nxt
    return c


def _pick_batch_block(B):
    """Split the batch into two blocks (one per v7x TensorCore) when halves stay sublane-aligned."""
    half = B // 2
    if B % 2 == 0 and half % 8 == 0:
        return half
    return B


def _unroll_for(tc):
    """Partial unroll factor for the recurrence time loop (review: 4 or 8, not full unroll)."""
    for u in (8, 4, 2):
        if tc % u == 0:
            return u
    return 1


# ----------------------------- Pallas kernels ------------------------------

def day_layer_kernel(x_ref, w_ref, b_ref, o_ref):
    # x_ref: (BB, TC, D) f32; w_ref: (BB, D, D) compute-dtype; b_ref: (BB, 1, D) f32
    # o_ref: (TC, BB, D) f32 time-major; built in VMEM then written with ONE contiguous store.
    BB = x_ref.shape[0]
    ys = []
    for b in range(BB):  # weights differ per batch element (day-specific)
        w = w_ref[b]
        y = jnp.dot(x_ref[b].astype(w.dtype), w, preferred_element_type=jnp.float32) + b_ref[b]
        ys.append(y / (1.0 + jnp.abs(y)))  # Softsign
    o_ref[...] = jnp.stack(ys, axis=1)


def input_gates_fused_kernel(x_ref, w_ref, b_ref, o_ref):
    # Fused gate matmul: x_ref (TN, Din) f32; w_ref (Din, 3H); b_ref (1, 3H) f32; o_ref (TN, 3H) f32.
    w = w_ref[...]
    o_ref[...] = jnp.dot(x_ref[...].astype(w.dtype), w,
                         preferred_element_type=jnp.float32) + b_ref[...]


def input_gates_pergate_kernel(x_ref, w_ref, b_ref, o_ref):
    # Per-gate fallback (H not a multiple of 128): w_ref (3, Din, H); o_ref (3, TN, H).
    x = x_ref[...]
    for g in range(3):
        w = w_ref[g]
        o_ref[g] = jnp.dot(x.astype(w.dtype), w,
                           preferred_element_type=jnp.float32) + b_ref[g]


def gru_recurrence_fused_kernel(gi_ref, whh_ref, bhh_ref, h0_ref, out_ref, hT_ref):
    # gi_ref: (TC, BB, 3H) f32; whh_ref: (H, 3H); bhh_ref: (1, 3H) f32; h0_ref: (BB, H) f32
    # out_ref: (TC, BB, H) f32; hT_ref: (BB, H) f32 (constant index over time -> carries the state).
    @pl.when(pl.program_id(1) == 0)
    def _():
        hT_ref[...] = h0_ref[...]

    H = out_ref.shape[-1]
    TC = out_ref.shape[0]
    whh = whh_ref[...]
    bhh = bhh_ref[...]

    def step(tc, h):
        # Single fused h @ (H,3H) matmul per step; gate slices are lane-aligned (H % 128 == 0).
        gh = jnp.dot(h.astype(whh.dtype), whh, preferred_element_type=jnp.float32) + bhh
        gi = gi_ref[tc]
        r = jax.nn.sigmoid(gi[:, :H] + gh[:, :H])
        z = jax.nn.sigmoid(gi[:, H:2 * H] + gh[:, H:2 * H])
        n = jnp.tanh(gi[:, 2 * H:] + r * gh[:, 2 * H:])
        h_new = (1.0 - z) * n + z * h
        out_ref[tc] = h_new
        return h_new

    hT_ref[...] = lax.fori_loop(0, TC, step, hT_ref[...], unroll=_unroll_for(TC))


def gru_recurrence_pergate_kernel(gi_ref, whh_ref, bhh_ref, h0_ref, out_ref, hT_ref):
    # Fallback for H % 128 != 0: gi_ref (3, TC, BB, H); whh_ref (3, H, H); bhh_ref (3, 1, H).
    @pl.when(pl.program_id(1) == 0)
    def _():
        hT_ref[...] = h0_ref[...]

    whh_r, whh_z, whh_n = whh_ref[0], whh_ref[1], whh_ref[2]
    bhh_r, bhh_z, bhh_n = bhh_ref[0], bhh_ref[1], bhh_ref[2]
    TC = out_ref.shape[0]

    def step(tc, h):
        hc = h.astype(whh_r.dtype)
        gh_r = jnp.dot(hc, whh_r, preferred_element_type=jnp.float32) + bhh_r
        gh_z = jnp.dot(hc, whh_z, preferred_element_type=jnp.float32) + bhh_z
        gh_n = jnp.dot(hc, whh_n, preferred_element_type=jnp.float32) + bhh_n
        r = jax.nn.sigmoid(gi_ref[0, tc] + gh_r)
        z = jax.nn.sigmoid(gi_ref[1, tc] + gh_z)
        n = jnp.tanh(gi_ref[2, tc] + r * gh_n)
        h_new = (1.0 - z) * n + z * h
        out_ref[tc] = h_new
        return h_new

    hT_ref[...] = lax.fori_loop(0, TC, step, hT_ref[...], unroll=_unroll_for(TC))


def output_linear_kernel(x_ref, w_ref, b_ref, o_ref):
    # x_ref: (TC, B, H) f32; w_ref: (H, C); b_ref: (1, C) f32; o_ref: (B, TC, C) f32.
    # One fused (TC*B, H)@(H, C) matmul, then an in-VMEM transpose to the batch-major output slab.
    TC, B, H = x_ref.shape
    C = w_ref.shape[-1]
    w = w_ref[...]
    y = jnp.dot(x_ref[...].reshape(TC * B, H).astype(w.dtype), w,
                preferred_element_type=jnp.float32) + b_ref[...]
    o_ref[...] = jnp.transpose(y.reshape(TC, B, C), (1, 0, 2))
    # TODO(synk): for small C, a lane-padded (C -> 128) output slab would avoid masked stores.


# ------------------------------ Wrappers -----------------------------------

def day_layer(x, day_w, day_b, *, t_cap=256):
    """x: (B, T, D) f32; day_w: (B, D, D); day_b: (B, 1, D) f32 -> time-major (T, B, D) f32."""
    B, T, D = x.shape
    BB = _pick_batch_block(B)
    wb = day_w.dtype.itemsize
    fixed = 2 * BB * D * (D * wb + 4)          # per-batch-block day weights + bias (double-buffered)
    per_t = 2 * 2 * BB * D * 4                 # x chunk + out chunk per timestep (double-buffered)
    TC = _fit_chunk(T, t_cap, 8, per_t, fixed, _VMEM_BUDGET)
    return pl.pallas_call(
        day_layer_kernel,
        out_shape=jax.ShapeDtypeStruct((T, B, D), jnp.float32),
        grid=(B // BB, T // TC),
        in_specs=[
            pl.BlockSpec((BB, TC, D), lambda b, c: (b, c, 0)),
            pl.BlockSpec((BB, D, D), lambda b, c: (b, 0, 0)),
            pl.BlockSpec((BB, 1, D), lambda b, c: (b, 0, 0)),
        ],
        out_specs=pl.BlockSpec((TC, BB, D), lambda b, c: (c, b, 0)),
        compiler_params=pltpu.CompilerParams(
            dimension_semantics=("parallel", "parallel"),
            vmem_limit_bytes=_VMEM_LIMIT_BYTES),
    )(x, day_w, day_b)


def input_gates_fused(x_flat, wih, bih, *, row_cap=1024):
    """x_flat: (N, Din) f32; wih: (Din, 3H); bih: (1, 3H) f32 -> gi (N, 3H) f32."""
    N, Din = x_flat.shape
    G = wih.shape[-1]
    wbytes = wih.dtype.itemsize
    fixed = 2 * (Din * G * wbytes + G * 4)
    per_row = 2 * (Din + G) * 4
    TN = _fit_chunk(N, row_cap, 8, per_row, fixed, _VMEM_BUDGET)
    return pl.pallas_call(
        input_gates_fused_kernel,
        out_shape=jax.ShapeDtypeStruct((N, G), jnp.float32),
        grid=(N // TN,),
        in_specs=[
            pl.BlockSpec((TN, Din), lambda i: (i, 0)),
            pl.BlockSpec((Din, G), lambda i: (0, 0)),
            pl.BlockSpec((1, G), lambda i: (0, 0)),
        ],
        out_specs=pl.BlockSpec((TN, G), lambda i: (i, 0)),
        compiler_params=pltpu.CompilerParams(
            dimension_semantics=("parallel",),
            vmem_limit_bytes=_VMEM_LIMIT_BYTES),
    )(x_flat, wih, bih)


def input_gates_pergate(x_flat, wih3, bih3, *, row_cap=1024):
    """x_flat: (N, Din) f32; wih3: (3, Din, H); bih3: (3, 1, H) f32 -> gi (3, N, H) f32."""
    N, Din = x_flat.shape
    H = wih3.shape[-1]
    wbytes = wih3.dtype.itemsize
    fixed = 2 * 3 * (Din * H * wbytes + H * 4)
    per_row = 2 * (Din + 3 * H) * 4
    TN = _fit_chunk(N, row_cap, 8, per_row, fixed, _VMEM_BUDGET)
    return pl.pallas_call(
        input_gates_pergate_kernel,
        out_shape=jax.ShapeDtypeStruct((3, N, H), jnp.float32),
        grid=(N // TN,),
        in_specs=[
            pl.BlockSpec((TN, Din), lambda i: (i, 0)),
            pl.BlockSpec((3, Din, H), lambda i: (0, 0, 0)),
            pl.BlockSpec((3, 1, H), lambda i: (0, 0, 0)),
        ],
        out_specs=pl.BlockSpec((3, TN, H), lambda i: (0, i, 0)),
        compiler_params=pltpu.CompilerParams(
            dimension_semantics=("parallel",),
            vmem_limit_bytes=_VMEM_LIMIT_BYTES),
    )(x_flat, wih3, bih3)


def gru_recurrence(gi, whh, bhh, h0, *, fused, t_cap=128):
    """Sequential GRU part. gi is (T, B, 3H) [fused] or (3, T, B, H) [per-gate]; h0: (B, H).

    Returns (out (T, B, H) f32, h_T (B, H) f32)."""
    if fused:
        T, B, G = gi.shape
        H = G // 3
    else:
        _, T, B, H = gi.shape
        G = 3 * H
    BB = _pick_batch_block(B)
    wbytes = whh.dtype.itemsize
    fixed = 2 * (H * G * wbytes + G * 4) + 2 * 2 * BB * H * 4   # weights + h0/hT blocks
    per_t = 2 * BB * (G + H) * 4                                # gi chunk + out chunk
    TC = _fit_chunk(T, t_cap, 1, per_t, fixed, _VMEM_BUDGET)

    if fused:
        kernel = gru_recurrence_fused_kernel
        in_specs = [
            pl.BlockSpec((TC, BB, G), lambda b, c: (c, b, 0)),
            pl.BlockSpec((H, G), lambda b, c: (0, 0)),
            pl.BlockSpec((1, G), lambda b, c: (0, 0)),
            pl.BlockSpec((BB, H), lambda b, c: (b, 0)),
        ]
    else:
        kernel = gru_recurrence_pergate_kernel
        in_specs = [
            pl.BlockSpec((3, TC, BB, H), lambda b, c: (0, c, b, 0)),
            pl.BlockSpec((3, H, H), lambda b, c: (0, 0, 0)),
            pl.BlockSpec((3, 1, H), lambda b, c: (0, 0, 0)),
            pl.BlockSpec((BB, H), lambda b, c: (b, 0)),
        ]

    return pl.pallas_call(
        kernel,
        out_shape=(jax.ShapeDtypeStruct((T, B, H), jnp.float32),
                   jax.ShapeDtypeStruct((B, H), jnp.float32)),
        grid=(B // BB, T // TC),
        in_specs=in_specs,
        out_specs=(pl.BlockSpec((TC, BB, H), lambda b, c: (c, b, 0)),
                   pl.BlockSpec((BB, H), lambda b, c: (b, 0))),   # constant over time -> carries state
        compiler_params=pltpu.CompilerParams(
            dimension_semantics=("parallel", "arbitrary"),
            vmem_limit_bytes=_VMEM_LIMIT_BYTES),
    )(gi, whh, bhh, h0)


def output_linear(x_tbh, w_hc, b_1c, *, t_cap=256):
    """x_tbh: (T, B, H) f32; w_hc: (H, C); b_1c: (1, C) f32 -> logits (B, T, C) f32."""
    T, B, H = x_tbh.shape
    C = w_hc.shape[-1]
    wbytes = w_hc.dtype.itemsize
    fixed = 2 * (H * C * wbytes + C * 4)
    per_t = 2 * B * (H + C) * 4
    TC = _fit_chunk(T, t_cap, 8, per_t, fixed, _VMEM_BUDGET)
    return pl.pallas_call(
        output_linear_kernel,
        out_shape=jax.ShapeDtypeStruct((B, T, C), jnp.float32),
        grid=(T // TC,),
        in_specs=[
            pl.BlockSpec((TC, B, H), lambda c: (c, 0, 0)),
            pl.BlockSpec((H, C), lambda c: (0, 0)),
            pl.BlockSpec((1, C), lambda c: (0, 0)),
        ],
        out_specs=pl.BlockSpec((B, TC, C), lambda c: (0, c, 0)),
        compiler_params=pltpu.CompilerParams(
            dimension_semantics=("parallel",),
            vmem_limit_bytes=_VMEM_LIMIT_BYTES),
    )(x_tbh, w_hc, b_1c)


def gru_decoder_forward(params, x, day_idx, return_state=False):
    """Pallas forward. x: (B, T, neural_dim) f32; day_idx: (B,) int32. params from prepare_params."""
    B, T, D = x.shape
    n_layers = len(params["wih"])
    H = params["h0"].shape[-1]
    fused = params["fused_gates"]

    # Day-specific affine + Softsign (gather is glue; matmul/activation in-kernel).
    dw = params["day_weights"][day_idx]                    # (B, D, D) compute dtype
    db = params["day_biases"][day_idx][:, None, :]         # (B, 1, D) f32
    layer_in = day_layer(x, dw, db)                        # (T, B, D) time-major f32

    h0_b = jnp.broadcast_to(params["h0"][0, 0], (B, H))
    hidden = []
    for l in range(n_layers):
        Din = layer_in.shape[-1]
        x_flat = layer_in.reshape(T * B, Din)              # free: time-major contiguous
        if fused:
            gi = input_gates_fused(x_flat, params["wih"][l], params["bih"][l]).reshape(T, B, 3 * H)
        else:
            gi = input_gates_pergate(x_flat, params["wih"][l], params["bih"][l]).reshape(3, T, B, H)
        layer_in, hT = gru_recurrence(gi, params["whh"][l], params["bhh"][l], h0_b, fused=fused)
        hidden.append(hT)
        # rnn_dropout between layers is 0 (eval semantics) -> no-op.
    hidden_states = jnp.stack(hidden, axis=0)              # (n_layers, B, H)

    logits = output_linear(layer_in, params["out_wT"], params["out_b2"])   # (B, T, C)

    if return_state:
        return logits, hidden_states
    return logits


# --------------------------- Pure-JAX reference -----------------------------

def reference_forward(params, x, day_idx):
    B, T, D = x.shape
    n_layers = len(params["w_ih"])
    H = params["h0"].shape[-1]

    dw = params["day_weights"][day_idx]
    db = params["day_biases"][day_idx][:, None, :]
    h = jnp.einsum("btd,bdk->btk", x, dw) + db
    h = h / (1.0 + jnp.abs(h))

    layer_in = h
    h0_b = jnp.broadcast_to(params["h0"][0, 0], (B, H))
    for l in range(n_layers):
        w_ih, w_hh = params["w_ih"][l], params["w_hh"][l]
        b_ih, b_hh = params["b_ih"][l], params["b_hh"][l]

        def step(hprev, xt):
            gi = xt @ w_ih.T + b_ih
            gh = hprev @ w_hh.T + b_hh
            r = jax.nn.sigmoid(gi[:, :H] + gh[:, :H])
            z = jax.nn.sigmoid(gi[:, H:2 * H] + gh[:, H:2 * H])
            n = jnp.tanh(gi[:, 2 * H:] + r * gh[:, 2 * H:])
            hnew = (1.0 - z) * n + z * hprev
            return hnew, hnew

        _, outs = lax.scan(step, h0_b, jnp.swapaxes(layer_in, 0, 1))
        layer_in = jnp.swapaxes(outs, 0, 1)

    return layer_in @ params["out_w"].T + params["out_b"]


# ----------------------------- Param init / packing -------------------------

def xavier_uniform(key, shape):
    fan_out, fan_in = shape
    a = math.sqrt(6.0 / (fan_in + fan_out))
    return jax.random.uniform(key, shape, jnp.float32, -a, a)


def init_params(key, neural_dim, n_units, n_days, n_classes, n_layers):
    keys = iter(jax.random.split(key, 4 * n_layers + 10))
    # Day weights are identity + small perturbation so the per-example day matmul path is
    # exercised non-trivially (module init is identity/zero).
    eye = jnp.stack([jnp.eye(neural_dim, dtype=jnp.float32)] * n_days)
    params = {
        "day_weights": eye + 0.1 * jax.random.normal(next(keys), (n_days, neural_dim, neural_dim), jnp.float32),
        "day_biases": 0.1 * jax.random.normal(next(keys), (n_days, neural_dim), jnp.float32),
        "w_ih": [], "w_hh": [], "b_ih": [], "b_hh": [],
    }
    bound = 1.0 / math.sqrt(n_units)
    for l in range(n_layers):
        din = neural_dim if l == 0 else n_units
        params["w_ih"].append(xavier_uniform(next(keys), (3 * n_units, din)))
        params["w_hh"].append(xavier_uniform(next(keys), (3 * n_units, n_units)))  # orthogonal approx
        params["b_ih"].append(jax.random.uniform(next(keys), (3 * n_units,), jnp.float32, -bound, bound))
        params["b_hh"].append(jax.random.uniform(next(keys), (3 * n_units,), jnp.float32, -bound, bound))
    params["out_w"] = xavier_uniform(next(keys), (n_classes, n_units))
    params["out_b"] = jax.random.uniform(next(keys), (n_classes,), jnp.float32, -bound, bound)
    params["h0"] = xavier_uniform(next(keys), (1, n_units)).reshape(1, 1, n_units)
    return params


def prepare_params(p, compute_dtype=jnp.bfloat16):
    """One-time conversion from torch-layout params to the kernel layout.

    Matmul weights are pre-transposed and pre-cast to `compute_dtype` (bf16 MXU operands);
    biases / hidden state stay f32.  Gate-fused layout is used when H % 128 == 0 (lane-aligned
    gate slices), otherwise the per-gate layout is used."""
    n_layers = len(p["w_ih"])
    H = p["h0"].shape[-1]
    fused = (H % 128 == 0)
    kp = {
        "fused_gates": fused,
        "day_weights": p["day_weights"].astype(compute_dtype),
        "day_biases": p["day_biases"],
        "h0": p["h0"],
        "out_wT": jnp.transpose(p["out_w"]).astype(compute_dtype),   # (H, C)
        "out_b2": p["out_b"].reshape(1, -1),                         # (1, C)
        "wih": [], "whh": [], "bih": [], "bhh": [],
    }
    for l in range(n_layers):
        wih, whh = p["w_ih"][l], p["w_hh"][l]   # (3H, Din), (3H, H); torch gate order r, z, n
        bih, bhh = p["b_ih"][l], p["b_hh"][l]
        if fused:
            kp["wih"].append(jnp.transpose(wih).astype(compute_dtype))   # (Din, 3H)
            kp["whh"].append(jnp.transpose(whh).astype(compute_dtype))   # (H, 3H)
            kp["bih"].append(bih.reshape(1, 3 * H))
            kp["bhh"].append(bhh.reshape(1, 3 * H))
        else:
            kp["wih"].append(jnp.stack(
                [jnp.transpose(wih[g * H:(g + 1) * H]) for g in range(3)]).astype(compute_dtype))  # (3, Din, H)
            kp["whh"].append(jnp.stack(
                [jnp.transpose(whh[g * H:(g + 1) * H]) for g in range(3)]).astype(compute_dtype))  # (3, H, H)
            kp["bih"].append(jnp.stack([bih[g * H:(g + 1) * H].reshape(1, H) for g in range(3)]))  # (3, 1, H)
            kp["bhh"].append(jnp.stack([bhh[g * H:(g + 1) * H].reshape(1, H) for g in range(3)]))  # (3, 1, H)
    return kp


# --------------------------------- main --------------------------------------

if __name__ == "__main__":
    # NOTE: for deployed configs pad B to a multiple of 8 and D/H/C to multiples of 128.
    # Two small cases: (A) per-gate fallback path in f32; (B) fused-gate path with bf16 MXU operands.
    cases = [
        # name,            D,  H,  C, layers, B, T, dtype,        max rel-L2 err
        ("pergate_f32",   16, 32,  8, 3,      2, 16, jnp.float32, 1e-4),
        ("fused_bf16",    16, 128, 8, 2,      2, 16, jnp.bfloat16, 3e-2),
    ]
    n_days = 3
    key = jax.random.PRNGKey(0)

    ok = True
    for i, (name, D, H, C, L, B, T, cdt, tol) in enumerate(cases):
        k_params, k_x = jax.random.split(jax.random.fold_in(key, i))
        raw_params = init_params(k_params, D, H, n_days, C, L)
        params = prepare_params(raw_params, compute_dtype=cdt)

        x = jax.random.normal(k_x, (B, T, D), jnp.float32)
        day_idx = jnp.array([0, 2], dtype=jnp.int32)

        logits, hidden = gru_decoder_forward(params, x, day_idx, return_state=True)
        logits = jax.block_until_ready(logits)
        hidden = jax.block_until_ready(hidden)
        ref = jax.block_until_ready(reference_forward(raw_params, x, day_idx))

        assert logits.shape == (B, T, C), (name, logits.shape)
        assert hidden.shape == (L, B, H), (name, hidden.shape)
        rel = float(jnp.linalg.norm(logits - ref) / (jnp.linalg.norm(ref) + 1e-30))
        if not (rel < tol):
            ok = False
            raise AssertionError(f"{name}: rel L2 error {rel:.2e} exceeds {tol:.1e}")

    if ok:
        print("KERNEL_OK")
</pallas_src>

<mosaic_0001>
module attributes {stable_mosaic.version = 11 : i64} {
  func.func @day_layer_kernel(%arg0: i32, %arg1: i32, %arg2: memref<2x16x16xf32, #tpu.memory_space<vmem>>, %arg3: memref<2x16x16xf32, #tpu.memory_space<vmem>>, %arg4: memref<2x1x16xf32, #tpu.memory_space<vmem>>, %arg5: memref<16x2x16xf32, #tpu.memory_space<vmem>>) attributes {dimension_semantics = [#tpu.dimension_semantics<parallel>, #tpu.dimension_semantics<parallel>], iteration_bounds = array<i64: 1, 1>, scalar_prefetch = 0 : i64, scratch_operands = 0 : i64, tpu.core_type = #tpu.core_type<tc>, window_params = [{transform_indices = @transform_0, window_bounds = array<i64: 2, 16, 16>}, {transform_indices = @transform_1, window_bounds = array<i64: 2, 16, 16>}, {transform_indices = @transform_2, window_bounds = array<i64: 2, 1, 16>}, {transform_indices = @transform_3, window_bounds = array<i64: 16, 2, 16>}]} {
    %c0 = arith.constant 0 : index
    %c0_0 = arith.constant 0 : index
    %c0_1 = arith.constant 0 : index
    %0 = vector.load %arg3[%c0, %c0_0, %c0_1] : memref<2x16x16xf32, #tpu.memory_space<vmem>>, vector<1x16x16xf32>
    %1 = vector.shape_cast %0 : vector<1x16x16xf32> to vector<16x16xf32>
    %c0_2 = arith.constant 0 : index
    %c0_3 = arith.constant 0 : index
    %c0_4 = arith.constant 0 : index
    %2 = vector.load %arg2[%c0_2, %c0_3, %c0_4] : memref<2x16x16xf32, #tpu.memory_space<vmem>>, vector<1x16x16xf32>
    %3 = vector.shape_cast %2 : vector<1x16x16xf32> to vector<16x16xf32>
    %cst = arith.constant dense<0.000000e+00> : vector<16x16xf32>
    %4 = tpu.matmul %3, %1, %cst {dimension_numbers = #tpu.dot_dimension_numbers<[1], [0], [0], [1], [0, 0, 1, 1], [], []>} : vector<16x16xf32>, vector<16x16xf32>, vector<16x16xf32> -> vector<16x16xf32>
    %c0_5 = arith.constant 0 : index
    %c0_6 = arith.constant 0 : index
    %c0_7 = arith.constant 0 : index
    %5 = vector.load %arg4[%c0_5, %c0_6, %c0_7] : memref<2x1x16xf32, #tpu.memory_space<vmem>>, vector<1x1x16xf32>
    %6 = vector.shape_cast %5 : vector<1x1x16xf32> to vector<1x16xf32>
    %7 = vector.broadcast %6 : vector<1x16xf32> to vector<16x16xf32>
    %8 = arith.addf %4, %7 : vector<16x16xf32>
    %9 = math.absf %8 : vector<16x16xf32>
    %cst_8 = arith.constant 1.000000e+00 : f32
    %10 = vector.broadcast %cst_8 : f32 to vector<16x16xf32>
    %11 = arith.addf %10, %9 : vector<16x16xf32>
    %12 = arith.divf %8, %11 : vector<16x16xf32>
    %c1 = arith.constant 1 : index
    %c0_9 = arith.constant 0 : index
    %c0_10 = arith.constant 0 : index
    %13 = vector.load %arg3[%c1, %c0_9, %c0_10] : memref<2x16x16xf32, #tpu.memory_space<vmem>>, vector<1x16x16xf32>
    %14 = vector.shape_cast %13 : vector<1x16x16xf32> to vector<16x16xf32>
    %c1_11 = arith.constant 1 : index
    %c0_12 = arith.constant 0 : index
    %c0_13 = arith.constant 0 : index
    %15 = vector.load %arg2[%c1_11, %c0_12, %c0_13] : memref<2x16x16xf32, #tpu.memory_space<vmem>>, vector<1x16x16xf32>
    %16 = vector.shape_cast %15 : vector<1x16x16xf32> to vector<16x16xf32>
    %cst_14 = arith.constant dense<0.000000e+00> : vector<16x16xf32>
    %17 = tpu.matmul %16, %14, %cst_14 {dimension_numbers = #tpu.dot_dimension_numbers<[1], [0], [0], [1], [0, 0, 1, 1], [], []>} : vector<16x16xf32>, vector<16x16xf32>, vector<16x16xf32> -> vector<16x16xf32>
    %c1_15 = arith.constant 1 : index
    %c0_16 = arith.constant 0 : index
    %c0_17 = arith.constant 0 : index
    %18 = vector.load %arg4[%c1_15, %c0_16, %c0_17] : memref<2x1x16xf32, #tpu.memory_space<vmem>>, vector<1x1x16xf32>
    %19 = vector.shape_cast %18 : vector<1x1x16xf32> to vector<1x16xf32>
    %20 = vector.broadcast %19 : vector<1x16xf32> to vector<16x16xf32>
    %21 = arith.addf %17, %20 : vector<16x16xf32>
    %22 = math.absf %21 : vector<16x16xf32>
    %cst_18 = arith.constant 1.000000e+00 : f32
    %23 = vector.broadcast %cst_18 : f32 to vector<16x16xf32>
    %24 = arith.addf %23, %22 : vector<16x16xf32>
    %25 = arith.divf %21, %24 : vector<16x16xf32>
    %26 = vector.shape_cast %12 : vector<16x16xf32> to vector<16x1x16xf32>
    %27 = vector.shape_cast %25 : vector<16x16xf32> to vector<16x1x16xf32>
    %28 = tpu.concatenate %26, %27 in 1 : vector<16x1x16xf32>, vector<16x1x16xf32> -> vector<16x2x16xf32>
    %c0_19 = arith.constant 0 : index
    %c0_20 = arith.constant 0 : index
    %c0_21 = arith.constant 0 : index
    %29 = vector.load %arg5[%c0_19, %c0_20, %c0_21] : memref<16x2x16xf32, #tpu.memory_space<vmem>>, vector<16x2x16xf32>
    tpu.vector_store %arg5[%c0_19, %c0_20, %c0_21], %28 {strides = array<i32>} : memref<16x2x16xf32, #tpu.memory_space<vmem>>, vector<16x2x16xf32>,
    return
  }
  func.func @transform_0(%arg0: i32, %arg1: i32) -> (i32, i32, i32) {
    %c0_i32 = arith.constant 0 : i32
    %c0_i32_0 = arith.constant 0 : i32
    return %arg0, %arg1, %c0_i32 : i32, i32, i32
  }
  func.func @transform_1(%arg0: i32, %arg1: i32) -> (i32, i32, i32) {
    %c0_i32 = arith.constant 0 : i32
    %c0_i32_0 = arith.constant 0 : i32
    %c0_i32_1 = arith.constant 0 : i32
    return %arg0, %c0_i32, %c0_i32_0 : i32, i32, i32
  }
  func.func @transform_2(%arg0: i32, %arg1: i32) -> (i32, i32, i32) {
    %c0_i32 = arith.constant 0 : i32
    %c0_i32_0 = arith.constant 0 : i32
    %c0_i32_1 = arith.constant 0 : i32
    return %arg0, %c0_i32, %c0_i32_0 : i32, i32, i32
  }
  func.func @transform_3(%arg0: i32, %arg1: i32) -> (i32, i32, i32) {
    %c0_i32 = arith.constant 0 : i32
    %c0_i32_0 = arith.constant 0 : i32
    return %arg1, %arg0, %c0_i32 : i32, i32, i32
  }
}

</mosaic_0001>

<llo_original>
// kernel: tpu_custom_call.1
$region0: #{tpu_custom_call.1}
  #allocation0 [shape = 'u32[]', space=smem, size = 0x4, offset = 0x4, fixed_abs, tag = 'smem constant byte address 0x4 - core index']
  #allocation1 [shape = 'u32[144,128]{1,0:T(1,128)}', space=vmem, size = 0x12000, scoped, tag = 'internal scratch']
  %s0 = inlined_call_operand.hbm [shape: f32[2,16,16], index: 0, kind: input, shape index: {}]
  %s1 = inlined_call_operand.hbm [shape: f32[2,16,16], index: 1, kind: input, shape index: {}]
  %s2 = inlined_call_operand.hbm [shape: f32[2,1,16], index: 2, kind: input, shape index: {}]
  %s3 = inlined_call_operand.hbm [shape: f32[16,2,16], index: 3, kind: output, shape index: {}]
  %s4 = sld [smem:[#allocation0]]
  $region34: #{tpu_custom_call.1} parent=0
    _
  %s6 = ssub.s32 1, %s4
  %s7 = scalar_select 0, %s6, %s4
  $region1: #{tpu_custom_call.1} parent=0
    #allocation2 [shape = 'u8[16384]{0}', space=vmem, size = 0x4000, scoped, tag = 'input window, operand 0, single buffered']
    #allocation3 [shape = 's32[1]{0}', space=sflag, size = 0x4, scoped, tag = 'scoped memory for tpu_custom_call.1']
    #allocation4 [shape = 's32[1]{0}', space=sflag, size = 0x4, scoped, tag = 'scoped memory for tpu_custom_call.1']
    #allocation5 [shape = 'u8[16384]{0}', space=vmem, size = 0x4000, scoped, tag = 'input window, operand 1, single buffered']
    #allocation6 [shape = 's32[1]{0}', space=sflag, size = 0x4, scoped, tag = 'scoped memory for tpu_custom_call.1']
    #allocation7 [shape = 'u8[1024]{0}', space=vmem, size = 0x400, scoped, tag = 'input window, operand 2, single buffered']
    #allocation8 [shape = 'u8[16384]{0}', space=vmem, size = 0x4000, scoped, tag = 'output window, operand 0, single buffered']
    %8 = vsyncpa [#allocation3], 0
    %9 = vsyncpa [#allocation6], 0
    %10 = vsyncpa [#allocation4], 0
    // Predicated region
    $region2: #{tpu_custom_call.1} parent=1 // pred_check
      _
    $region3: #{tpu_custom_call.1} parent=1 // pred_check_branch
      %12 = sbr.rel (0) target = $region5
    $region4: #{tpu_custom_call.1} parent=1 // pred_region
      %s14 = ssub.s32 512, 512
      %15 = vsyncadd [#allocation3], %s14
      %s16 = sshll.u32 [#allocation2], 4
      %s17 = int_to_ptr.vmem [resolvable:$true] %s16
      %22 = dma.hbm_to_vmem [thread:$0]  %s0, 512, %s17, [#allocation3], 128, 128, 8
    $region5: #{tpu_custom_call.1} parent=1 // pred_fallthru
      _
    // Predicated region
    $region6: #{tpu_custom_call.1} parent=1 // pred_check
      _
    $region7: #{tpu_custom_call.1} parent=1 // pred_check_branch
      %24 = sbr.rel (0) target = $region9
    $region8: #{tpu_custom_call.1} parent=1 // pred_region
      %s26 = ssub.s32 512, 512
      %27 = vsyncadd [#allocation6], %s26
      %s28 = sshll.u32 [#allocation5], 4
      %s29 = int_to_ptr.vmem [resolvable:$true] %s28
      %34 = dma.hbm_to_vmem [thread:$0]  %s1, 512, %s29, [#allocation6], 128, 128, 8
    $region9: #{tpu_custom_call.1} parent=1 // pred_fallthru
      _
    // Predicated region
    $region10: #{tpu_custom_call.1} parent=1 // pred_check
      _
    $region11: #{tpu_custom_call.1} parent=1 // pred_check_branch
      %36 = sbr.rel (0) target = $region13
    $region12: #{tpu_custom_call.1} parent=1 // pred_region
      %s38 = ssub.s32 32, 32
      %39 = vsyncadd [#allocation6], %s38
      %s40 = sshll.u32 [#allocation7], 4
      %s41 = int_to_ptr.vmem [resolvable:$true] %s40
      %46 = dma.hbm_to_vmem [thread:$0]  %s2, 32, %s41, [#allocation6], 16, 16, 1
    $region13: #{tpu_custom_call.1} parent=1 // pred_fallthru
      _
    // Predicated region
    $region14: #{tpu_custom_call.1} parent=1 // pred_check
      _
    $region15: #{tpu_custom_call.1} parent=1 // pred_check_branch
      %48 = sbr.rel (0) target = $region17
    $region16: #{tpu_custom_call.1} parent=1 // pred_region
      %49 = dma.done [#allocation3], 512
    $region17: #{tpu_custom_call.1} parent=1 // pred_fallthru
      _
    // Predicated region
    $region18: #{tpu_custom_call.1} parent=1 // pred_check
      _
    $region19: #{tpu_custom_call.1} parent=1 // pred_check_branch
      %51 = sbr.rel (0) target = $region21
    $region20: #{tpu_custom_call.1} parent=1 // pred_region
      %52 = dma.done [#allocation6], 512
    $region21: #{tpu_custom_call.1} parent=1 // pred_fallthru
      _
    // Predicated region
    $region22: #{tpu_custom_call.1} parent=1 // pred_check
      _
    $region23: #{tpu_custom_call.1} parent=1 // pred_check_branch
      %54 = sbr.rel (0) target = $region25
    $region24: #{tpu_custom_call.1} parent=1 // pred_region
      %55 = dma.done [#allocation6], 32
    $region25: #{tpu_custom_call.1} parent=1 // pred_fallthru
      _
    %v56 = vld [vmem:[#allocation5] sm:$0xff]
    %v57 = vld [vmem:[#allocation5 + $0x8] sm:$0xff]
    %v58 = vld [vmem:[#allocation2] sm:$0xff]
    %v59 = vld [vmem:[#allocation2 + $0x8] sm:$0xff]
    %v60 = vld [vmem:[#allocation7] sm:$0x1]
    %v62 = vlaneseq
    %v63 = vshrl.u32 %v62, 7
    %v64 = vsub.s32 0, %v63
    %v65 = vrot.slane %v60, %v64
    %vm67 = vcmask 130048
    %v69 = vsel %vm67, %v58, 0
    %v72 = vsel %vm67, %v59, 0
    %74 = vmatprep.subr.mxu0 0.0
    %75 = vmatpush1.msra.mxu0 %v56
    %76 = vmatprep.subr.mxu0 0.0
    %77 = vmatpush1.msra.mxu0 %v57
    %78 = vmatprep.subr.mxu0 0.0
    %79 = vmatpush1.msra.mxu0 0.0
    %80 = vmatprep.subr.mxu0 0.0
    %81 = vmatpush1.msra.mxu0 0.0
    %82 = vmatprep.subr.mxu0 0.0
    %83 = vmatpush1.msra.mxu0 0.0
    %84 = vmatprep.subr.mxu0 0.0
    %85 = vmatpush1.msra.mxu0 0.0
    %86 = vmatprep.subr.mxu0 0.0
    %87 = vmatpush1.msra.mxu0 0.0
    %88 = vmatprep.subr.mxu0 0.0
    %89 = vmatpush1.msra.mxu0 0.0
    %90 = vmatprep.subr.mxu0 0.0
    %91 = vmatpush1.msra.mxu0 0.0
    %92 = vmatprep.subr.mxu0 0.0
    %93 = vmatpush1.msra.mxu0 0.0
    %94 = vmatprep.subr.mxu0 0.0
    %95 = vmatpush1.msra.mxu0 0.0
    %96 = vmatprep.subr.mxu0 0.0
    %97 = vmatpush1.msra.mxu0 0.0
    %98 = vmatprep.subr.mxu0 0.0
    %99 = vmatpush1.msra.mxu0 0.0
    %100 = vmatprep.subr.mxu0 0.0
    %101 = vmatpush1.msra.mxu0 0.0
    %102 = vmatprep.subr.mxu0 0.0
    %103 = vmatpush1.msra.mxu0 0.0
    %104 = vmatprep.subr.mxu0 0.0
    %105 = vmatpush1.msra.mxu0 0.0
    %106 = vmatprep.subr.mxu0 0.0
    %107 = vmatpush1.msra.mxu0 0.0
    %108 = vmatprep.subr.mxu0 0.0
    %109 = vmatpush1.msra.mxu0 0.0
    %110 = vmatprep.subr.mxu0 0.0
    %111 = vmatpush1.msra.mxu0 0.0
    %112 = vmatprep.subr.mxu0 0.0
    %113 = vmatpush1.msra.mxu0 0.0
    %114 = vmatprep.subr.mxu0 0.0
    %115 = vmatpush1.msra.mxu0 0.0
    %116 = vmatprep.subr.mxu0 0.0
    %117 = vmatpush1.msra.mxu0 0.0
    %118 = vmatprep.subr.mxu0 0.0
    %119 = vmatpush1.msra.mxu0 0.0
    %120 = vmatprep.subr.mxu0 0.0
    %121 = vmatpush1.msra.mxu0 0.0
    %122 = vmatprep.subr.mxu0 0.0
    %123 = vmatpush1.msra.mxu0 0.0
    %124 = vmatprep.subr.mxu0 0.0
    %125 = vmatpush1.msra.mxu0 0.0
    %126 = vmatprep.subr.mxu0 0.0
    %127 = vmatpush1.msra.mxu0 0.0
    %128 = vmatprep.subr.mxu0 0.0
    %129 = vmatpush1.msra.mxu0 0.0
    %130 = vmatprep.subr.mxu0 0.0
    %131 = vmatpush1.msra.mxu0 0.0
    %132 = vmatprep.subr.mxu0 0.0
    %133 = vmatpush1.msra.mxu0 0.0
    %134 = vmatprep.subr.mxu0 0.0
    %135 = vmatpush1.msra.mxu0 0.0
    %136 = vmatprep.subr.mxu0 0.0
    %137 = vmatpush1.msra.mxu0 0.0
    %138 = vmatprep.mubr.f32.mxu0 0.0
    %139 = vmatmul.mubr.f32.gmra.mrb[0].mxu0 %v69
    %v140 = vpop.f32.mrb[0].mxu0
    %v141 = vadd.f32 %v65, %v140
    %v142 = vpop.f32.mrb[0].mxu0
    %143 = vmatprep.mubr.f32.mxu0 0.0
    %144 = vmatmul.mubr.f32.gmra.mrb[0].mxu0 %v72
    %v145 = vpop.f32.mrb[0].mxu0
    %v146 = vadd.f32 %v65, %v145
    %v147 = vpop.f32.mrb[0].mxu0
    %148 = vdwg.mxu0
    %v149 = vand.u32 2147483647, %v141
    %v150 = vand.u32 2147483647, %v146
    %v151 = vadd.f32 %v149, 1.0
    %v152 = vadd.f32 %v150, 1.0
    %v153 = vrcp.pop %v151
    %v154 = vmul.f32 %v141, %v153
    %v155 = vrcp.pop %v152
    %v156 = vmul.f32 %v146, %v155
    %s157 = scalar_lea.vmem [#allocation5], 16
    %v158 = vld [vmem:[%s157] sm:$0xff]
    %v159 = vld [vmem:[%s157 + $0x8] sm:$0xff]
    %s160 = scalar_lea.vmem [#allocation2], 16
    %v161 = vld [vmem:[%s160] sm:$0xff]
    %v162 = vld [vmem:[%s160 + $0x8] sm:$0xff]
    %s163 = scalar_lea.vmem [#allocation7], 1
    %v164 = vld [vmem:[%s163] sm:$0x1]
    %v166 = vlaneseq
    %v167 = vshrl.u32 %v166, 7
    %v168 = vsub.s32 0, %v167
    %v169 = vrot.slane %v164, %v168
    %v172 = vsel %vm67, %v161, 0
    %v175 = vsel %vm67, %v162, 0
    %177 = vmatprep.subr.mxu0 0.0
    %178 = vmatpush1.msra.mxu0 %v158
    %179 = vmatprep.subr.mxu0 0.0
    %180 = vmatpush1.msra.mxu0 %v159
    %181 = vmatprep.subr.mxu0 0.0
    %182 = vmatpush1.msra.mxu0 0.0
    %183 = vmatprep.subr.mxu0 0.0
    %184 = vmatpush1.msra.mxu0 0.0
    %185 = vmatprep.subr.mxu0 0.0
    %186 = vmatpush1.msra.mxu0 0.0
    %187 = vmatprep.subr.mxu0 0.0
    %188 = vmatpush1.msra.mxu0 0.0
    %189 = vmatprep.subr.mxu0 0.0
    %190 = vmatpush1.msra.mxu0 0.0
    %191 = vmatprep.subr.mxu0 0.0
    %192 = vmatpush1.msra.mxu0 0.0
    %193 = vmatprep.subr.mxu0 0.0
    %194 = vmatpush1.msra.mxu0 0.0
    %195 = vmatprep.subr.mxu0 0.0
    %196 = vmatpush1.msra.mxu0 0.0
    %197 = vmatprep.subr.mxu0 0.0
    %198 = vmatpush1.msra.mxu0 0.0
    %199 = vmatprep.subr.mxu0 0.0
    %200 = vmatpush1.msra.mxu0 0.0
    %201 = vmatprep.subr.mxu0 0.0
    %202 = vmatpush1.msra.mxu0 0.0
    %203 = vmatprep.subr.mxu0 0.0
    %204 = vmatpush1.msra.mxu0 0.0
    %205 = vmatprep.subr.mxu0 0.0
    %206 = vmatpush1.msra.mxu0 0.0
    %207 = vmatprep.subr.mxu0 0.0
    %208 = vmatpush1.msra.mxu0 0.0
    %209 = vmatprep.subr.mxu0 0.0
    %210 = vmatpush1.msra.mxu0 0.0
    %211 = vmatprep.subr.mxu0 0.0
    %212 = vmatpush1.msra.mxu0 0.0
    %213 = vmatprep.subr.mxu0 0.0
    %214 = vmatpush1.msra.mxu0 0.0
    %215 = vmatprep.subr.mxu0 0.0
    %216 = vmatpush1.msra.mxu0 0.0
    %217 = vmatprep.subr.mxu0 0.0
    %218 = vmatpush1.msra.mxu0 0.0
    %219 = vmatprep.subr.mxu0 0.0
    %220 = vmatpush1.msra.mxu0 0.0
    %221 = vmatprep.subr.mxu0 0.0
    %222 = vmatpush1.msra.mxu0 0.0
    %223 = vmatprep.subr.mxu0 0.0
    %224 = vmatpush1.msra.mxu0 0.0
    %225 = vmatprep.subr.mxu0 0.0
    %226 = vmatpush1.msra.mxu0 0.0
    %227 = vmatprep.subr.mxu0 0.0
    %228 = vmatpush1.msra.mxu0 0.0
    %229 = vmatprep.subr.mxu0 0.0
    %230 = vmatpush1.msra.mxu0 0.0
    %231 = vmatprep.subr.mxu0 0.0
    %232 = vmatpush1.msra.mxu0 0.0
    %233 = vmatprep.subr.mxu0 0.0
    %234 = vmatpush1.msra.mxu0 0.0
    %235 = vmatprep.subr.mxu0 0.0
    %236 = vmatpush1.msra.mxu0 0.0
    %237 = vmatprep.subr.mxu0 0.0
    %238 = vmatpush1.msra.mxu0 0.0
    %239 = vmatprep.subr.mxu0 0.0
    %240 = vmatpush1.msra.mxu0 0.0
    %241 = vmatprep.mubr.f32.mxu0 0.0
    %242 = vmatmul.mubr.f32.gmra.mrb[0].mxu0 %v172
    %v243 = vpop.f32.mrb[0].mxu0
    %v244 = vadd.f32 %v169, %v243
    %v245 = vpop.f32.mrb[0].mxu0
    %246 = vmatprep.mubr.f32.mxu0 0.0
    %247 = vmatmul.mubr.f32.gmra.mrb[0].mxu0 %v175
    %v248 = vpop.f32.mrb[0].mxu0
    %v249 = vadd.f32 %v169, %v248
    %v250 = vpop.f32.mrb[0].mxu0
    %251 = vdwg.mxu0
    %v252 = vand.u32 2147483647, %v244
    %v253 = vand.u32 2147483647, %v249
    %v254 = vadd.f32 %v252, 1.0
    %v255 = vadd.f32 %v253, 1.0
    %v256 = vrcp.pop %v254
    %v257 = vmul.f32 %v244, %v256
    %v258 = vrcp.pop %v255
    %v259 = vmul.f32 %v249, %v258
    %v262 = vcombine.high %v154, %v154
    %v264 = vunpack.c.l.s4 1966171168
    %v265 = vunpack.c.0.s8 %v264
    %v266 = vlaneseq
    %v267 = vshrl.u32 %v266, 7
    %v268 = vsub.s32 %v265, %v267
    %v269 = vrot.slane %v154, %v268
    %v271 = vunpack.c.l.s4 1966171168
    %v272 = vunpack.c.0.s8 %v271
    %v273 = vlaneseq
    %v274 = vshrl.u32 %v273, 7
    %v275 = vsub.s32 %v272, %v274
    %v276 = vrot.slane %v262, %v275
    %v277 = vcombine.high %v269, %v269
    %v278 = vcombine.high %v276, %v276
    %v280 = vunpack.c.l.s4 1966171168
    %v281 = vunpack.c.0.s8 %v280
    %v282 = vlaneseq
    %v283 = vshrl.u32 %v282, 7
    %v284 = vsub.s32 %v281, %v283
    %v285 = vrot.slane %v269, %v284
    %v287 = vunpack.c.l.s4 1966171168
    %v288 = vunpack.c.0.s8 %v287
    %v289 = vlaneseq
    %v290 = vshrl.u32 %v289, 7
    %v291 = vsub.s32 %v288, %v290
    %v292 = vrot.slane %v276, %v291
    %v294 = vunpack.c.l.s4 1966171168
    %v295 = vunpack.c.0.s8 %v294
    %v296 = vlaneseq
    %v297 = vshrl.u32 %v296, 7
    %v298 = vsub.s32 %v295, %v297
    %v299 = vrot.slane %v277, %v298
    %v301 = vunpack.c.l.s4 1966171168
    %v302 = vunpack.c.0.s8 %v301
    %v303 = vlaneseq
    %v304 = vshrl.u32 %v303, 7
    %v305 = vsub.s32 %v302, %v304
    %v306 = vrot.slane %v278, %v305
    %v307 = vcombine.high %v285, %v285
    %v308 = vcombine.high %v292, %v292
    %v309 = vcombine.high %v299, %v299
    %v310 = vcombine.high %v306, %v306
    %v311 = vcombine.high %v156, %v156
    %v313 = vunpack.c.l.s4 1966171168
    %v314 = vunpack.c.0.s8 %v313
    %v315 = vlaneseq
    %v316 = vshrl.u32 %v315, 7
    %v317 = vsub.s32 %v314, %v316
    %v318 = vrot.slane %v156, %v317
    %v320 = vunpack.c.l.s4 1966171168
    %v321 = vunpack.c.0.s8 %v320
    %v322 = vlaneseq
    %v323 = vshrl.u32 %v322, 7
    %v324 = vsub.s32 %v321, %v323
    %v325 = vrot.slane %v311, %v324
    %v326 = vcombine.high %v318, %v318
    %v327 = vcombine.high %v325, %v325
    %v329 = vunpack.c.l.s4 1966171168
    %v330 = vunpack.c.0.s8 %v329
    %v331 = vlaneseq
    %v332 = vshrl.u32 %v331, 7
    %v333 = vsub.s32 %v330, %v332
    %v334 = vrot.slane %v318, %v333
    %v336 = vunpack.c.l.s4 1966171168
    %v337 = vunpack.c.0.s8 %v336
    %v338 = vlaneseq
    %v339 = vshrl.u32 %v338, 7
    %v340 = vsub.s32 %v337, %v339
    %v341 = vrot.slane %v325, %v340
    %v343 = vunpack.c.l.s4 1966171168
    %v344 = vunpack.c.0.s8 %v343
    %v345 = vlaneseq
    %v346 = vshrl.u32 %v345, 7
    %v347 = vsub.s32 %v344, %v346
    %v348 = vrot.slane %v326, %v347
    %v350 = vunpack.c.l.s4 1966171168
    %v351 = vunpack.c.0.s8 %v350
    %v352 = vlaneseq
    %v353 = vshrl.u32 %v352, 7
    %v354 = vsub.s32 %v351, %v353
    %v355 = vrot.slane %v327, %v354
    %v356 = vcombine.high %v334, %v334
    %v357 = vcombine.high %v341, %v341
    %v358 = vcombine.high %v348, %v348
    %v359 = vcombine.high %v355, %v355
    %v378 = vcombine.high %v257, %v257
    %v380 = vunpack.c.l.s4 1966171168
    %v381 = vunpack.c.0.s8 %v380
    %v382 = vlaneseq
    %v383 = vshrl.u32 %v382, 7
    %v384 = vsub.s32 %v381, %v383
    %v385 = vrot.slane %v257, %v384
    %v387 = vunpack.c.l.s4 1966171168
    %v388 = vunpack.c.0.s8 %v387
    %v389 = vlaneseq
    %v390 = vshrl.u32 %v389, 7
    %v391 = vsub.s32 %v388, %v390
    %v392 = vrot.slane %v378, %v391
    %v393 = vcombine.high %v385, %v385
    %v394 = vcombine.high %v392, %v392
    %v396 = vunpack.c.l.s4 1966171168
    %v397 = vunpack.c.0.s8 %v396
    %v398 = vlaneseq
    %v399 = vshrl.u32 %v398, 7
    %v400 = vsub.s32 %v397, %v399
    %v401 = vrot.slane %v385, %v400
    %v403 = vunpack.c.l.s4 1966171168
    %v404 = vunpack.c.0.s8 %v403
    %v405 = vlaneseq
    %v406 = vshrl.u32 %v405, 7
    %v407 = vsub.s32 %v404, %v406
    %v408 = vrot.slane %v392, %v407
    %v410 = vunpack.c.l.s4 1966171168
    %v411 = vunpack.c.0.s8 %v410
    %v412 = vlaneseq
    %v413 = vshrl.u32 %v412, 7
    %v414 = vsub.s32 %v411, %v413
    %v415 = vrot.slane %v393, %v414
    %v417 = vunpack.c.l.s4 1966171168
    %v418 = vunpack.c.0.s8 %v417
    %v419 = vlaneseq
    %v420 = vshrl.u32 %v419, 7
    %v421 = vsub.s32 %v418, %v420
    %v422 = vrot.slane %v394, %v421
    %v423 = vcombine.high %v401, %v401
    %v424 = vcombine.high %v408, %v408
    %v425 = vcombine.high %v415, %v415
    %v426 = vcombine.high %v422, %v422
    %v427 = vcombine.high %v259, %v259
    %v429 = vunpack.c.l.s4 1966171168
    %v430 = vunpack.c.0.s8 %v429
    %v431 = vlaneseq
    %v432 = vshrl.u32 %v431, 7
    %v433 = vsub.s32 %v430, %v432
    %v434 = vrot.slane %v259, %v433
    %v436 = vunpack.c.l.s4 1966171168
    %v437 = vunpack.c.0.s8 %v436
    %v438 = vlaneseq
    %v439 = vshrl.u32 %v438, 7
    %v440 = vsub.s32 %v437, %v439
    %v441 = vrot.slane %v427, %v440
    %v442 = vcombine.high %v434, %v434
    %v443 = vcombine.high %v441, %v441
    %v445 = vunpack.c.l.s4 1966171168
    %v446 = vunpack.c.0.s8 %v445
    %v447 = vlaneseq
    %v448 = vshrl.u32 %v447, 7
    %v449 = vsub.s32 %v446, %v448
    %v450 = vrot.slane %v434, %v449
    %v452 = vunpack.c.l.s4 1966171168
    %v453 = vunpack.c.0.s8 %v452
    %v454 = vlaneseq
    %v455 = vshrl.u32 %v454, 7
    %v456 = vsub.s32 %v453, %v455
    %v457 = vrot.slane %v441, %v456
    %v459 = vunpack.c.l.s4 1966171168
    %v460 = vunpack.c.0.s8 %v459
    %v461 = vlaneseq
    %v462 = vshrl.u32 %v461, 7
    %v463 = vsub.s32 %v460, %v462
    %v464 = vrot.slane %v442, %v463
    %v466 = vunpack.c.l.s4 1966171168
    %v467 = vunpack.c.0.s8 %v466
    %v468 = vlaneseq
    %v469 = vshrl.u32 %v468, 7
    %v470 = vsub.s32 %v467, %v469
    %v471 = vrot.slane %v443, %v470
    %v472 = vcombine.high %v450, %v450
    %v473 = vcombine.high %v457, %v457
    %v474 = vcombine.high %v464, %v464
    %v475 = vcombine.high %v471, %v471
    %v476 = vlaneseq
    %v477 = vshrl.u32 %v476, 7
    %v478 = vsub.s32 0, %v477
    %v479 = vrot.slane %v401, %v478
    %v480 = vlaneseq
    %v481 = vshrl.u32 %v480, 7
    %v482 = vsub.s32 0, %v481
    %v483 = vrot.slane %v415, %v482
    %v484 = vlaneseq
    %v485 = vshrl.u32 %v484, 7
    %v486 = vsub.s32 0, %v485
    %v487 = vrot.slane %v423, %v486
    %v488 = vlaneseq
    %v489 = vshrl.u32 %v488, 7
    %v490 = vsub.s32 0, %v489
    %v491 = vrot.slane %v425, %v490
    %v492 = vlaneseq
    %v493 = vshrl.u32 %v492, 7
    %v494 = vsub.s32 0, %v493
    %v495 = vrot.slane %v408, %v494
    %v496 = vlaneseq
    %v497 = vshrl.u32 %v496, 7
    %v498 = vsub.s32 0, %v497
    %v499 = vrot.slane %v422, %v498
    %v500 = vlaneseq
    %v501 = vshrl.u32 %v500, 7
    %v502 = vsub.s32 0, %v501
    %v503 = vrot.slane %v424, %v502
    %v504 = vlaneseq
    %v505 = vshrl.u32 %v504, 7
    %v506 = vsub.s32 0, %v505
    %v507 = vrot.slane %v426, %v506
    %v508 = vlaneseq
    %v509 = vshrl.u32 %v508, 7
    %v510 = vsub.s32 0, %v509
    %v511 = vrot.slane %v450, %v510
    %v512 = vlaneseq
    %v513 = vshrl.u32 %v512, 7
    %v514 = vsub.s32 0, %v513
    %v515 = vrot.slane %v464, %v514
    %v516 = vlaneseq
    %v517 = vshrl.u32 %v516, 7
    %v518 = vsub.s32 0, %v517
    %v519 = vrot.slane %v472, %v518
    %v520 = vlaneseq
    %v521 = vshrl.u32 %v520, 7
    %v522 = vsub.s32 0, %v521
    %v523 = vrot.slane %v474, %v522
    %v524 = vlaneseq
    %v525 = vshrl.u32 %v524, 7
    %v526 = vsub.s32 0, %v525
    %v527 = vrot.slane %v457, %v526
    %v528 = vlaneseq
    %v529 = vshrl.u32 %v528, 7
    %v530 = vsub.s32 0, %v529
    %v531 = vrot.slane %v471, %v530
    %v532 = vlaneseq
    %v533 = vshrl.u32 %v532, 7
    %v534 = vsub.s32 0, %v533
    %v535 = vrot.slane %v473, %v534
    %v536 = vlaneseq
    %v537 = vshrl.u32 %v536, 7
    %v538 = vsub.s32 0, %v537
    %v539 = vrot.slane %v475, %v538
    %vm556 = vcmask 1040384
    %v557 = vsel %vm556, %v285, %v479
    %v558 = vsel %vm556, %v299, %v483
    %v559 = vsel %vm556, %v307, %v487
    %v560 = vsel %vm556, %v309, %v491
    %v561 = vsel %vm556, %v292, %v495
    %v562 = vsel %vm556, %v306, %v499
    %v563 = vsel %vm556, %v308, %v503
    %v564 = vsel %vm556, %v310, %v507
    %v565 = vsel %vm556, %v334, %v511
    %v566 = vsel %vm556, %v348, %v515
    %v567 = vsel %vm556, %v356, %v519
    %v568 = vsel %vm556, %v358, %v523
    %v569 = vsel %vm556, %v341, %v527
    %v570 = vsel %vm556, %v355, %v531
    %v571 = vsel %vm556, %v357, %v535
    %v572 = vsel %vm556, %v359, %v539
    %vm573 = vcmask 123904
    %574 = vst.msk [vmem:[#allocation8] sm:$0x3] %vm573, %v557
    %575 = vst.msk [vmem:[#allocation8 + $0x2] sm:$0x3] %vm573, %v558
    %576 = vst.msk [vmem:[#allocation8 + $0x4] sm:$0x3] %vm573, %v559
    %577 = vst.msk [vmem:[#allocation8 + $0x6] sm:$0x3] %vm573, %v560
    %578 = vst.msk [vmem:[#allocation8 + $0x8] sm:$0x3] %vm573, %v561
    %579 = vst.msk [vmem:[#allocation8 + $0xa] sm:$0x3] %vm573, %v562
    %580 = vst.msk [vmem:[#allocation8 + $0xc] sm:$0x3] %vm573, %v563
    %581 = vst.msk [vmem:[#allocation8 + $0xe] sm:$0x3] %vm573, %v564
    %582 = vst.msk [vmem:[#allocation8 + $0x10] sm:$0x3] %vm573, %v565
    %583 = vst.msk [vmem:[#allocation8 + $0x12] sm:$0x3] %vm573, %v566
    %584 = vst.msk [vmem:[#allocation8 + $0x14] sm:$0x3] %vm573, %v567
    %585 = vst.msk [vmem:[#allocation8 + $0x16] sm:$0x3] %vm573, %v568
    %586 = vst.msk [vmem:[#allocation8 + $0x18] sm:$0x3] %vm573, %v569
    %587 = vst.msk [vmem:[#allocation8 + $0x1a] sm:$0x3] %vm573, %v570
    %588 = vst.msk [vmem:[#allocation8 + $0x1c] sm:$0x3] %vm573, %v571
    %589 = vst.msk [vmem:[#allocation8 + $0x1e] sm:$0x3] %vm573, %v572
    // Predicated region
    $region26: #{tpu_custom_call.1} parent=1 // pred_check
      _
    $region27: #{tpu_custom_call.1} parent=1 // pred_check_branch
      %591 = sbr.rel (0) target = $region29
    $region28: #{tpu_custom_call.1} parent=1 // pred_region
      %s593 = ssub.s32 512, 512
      %594 = vsyncadd [#allocation4], %s593
      %s595 = sshll.u32 [#allocation8], 4
      %s596 = int_to_ptr.vmem [resolvable:$true] %s595
      %601 = dma.vmem_to_hbm [thread:$0]  %s596, 512, %s3, [#allocation4], 32, 32, 2
    $region29: #{tpu_custom_call.1} parent=1 // pred_fallthru
      _
    // Predicated region
    $region30: #{tpu_custom_call.1} parent=1 // pred_check
      _
    $region31: #{tpu_custom_call.1} parent=1 // pred_check_branch
      %603 = sbr.rel (0) target = $region33
    $region32: #{tpu_custom_call.1} parent=1 // pred_region
      %604 = dma.done [#allocation4], 512
    $region33: #{tpu_custom_call.1} parent=1 // pred_fallthru
      _
    %605 = vsyncpa [#allocation3], 1
    %606 = vsyncpa [#allocation6], 1
    %607 = vsyncpa [#allocation4], 1

</llo_original>
